<compile_context>
chip_gen: v7x
topology: tpu7x:2x2x1
jax: 0.10.0
libtpu: 0.0.40
codegen_flags: <defaults>
</compile_context>

<pallas_src>
import jax
import jax.numpy as jnp
import numpy as np
from jax.experimental import pallas as pl
from jax.experimental.pallas import tpu as pltpu

TIMEDIM = 33
USER_EMB_DIM = 50
TIME_EMB_DIM = 10
TEXT_EMB_DIM = 50
ENC_DIM = 40
FINAL_DIM = 64
NUM4_DIM = 17
TEXTNUM_DIM = 5
OUT_DIM = 3

SEG = 128  # lane-aligned segment width for the packed input slab
PACKED_DIM = 2 * SEG  # 256

SEG1_REAL = USER_EMB_DIM + TIMEDIM                    # 83
SEG2_REAL = NUM4_DIM + TEXTNUM_DIM + TEXT_EMB_DIM     # 72


def edmodel_kernel(x_ref, w1_ref, b1_ref, w2e_ref, w2r_ref, b2_ref,
                   w3_ref, b3_ref, out_ref):
    f32 = jnp.float32

    # enc = relu([user_emb | time] @ W1 + b1)  (time Linear folded into W1/b1)
    enc = jnp.dot(x_ref[:, :SEG], w1_ref[...], preferred_element_type=f32)
    enc = jnp.maximum(enc + b1_ref[...], 0.0)  # Dropout(0.3) identity in eval

    # h = relu(enc @ W2_enc + [num4|textnum|sen] @ W2_rest + b2)
    h = (jnp.dot(enc, w2e_ref[...], preferred_element_type=f32)
         + jnp.dot(x_ref[:, SEG:], w2r_ref[...], preferred_element_type=f32)
         + b2_ref[...])
    h = jnp.maximum(h, 0.0)  # Dropout identity in eval

    # mlp1: Linear(64 -> 3); trailing Dropout identity in eval.
    out_ref[...] = (jnp.dot(h, w3_ref[...], preferred_element_type=f32)
                    + b3_ref[...])


def init_params(key, len_userdic, len_textdic):
    ks = jax.random.split(key, 6)

    def lin(k, fan_in, fan_out):
        bound = 1.0 / np.sqrt(fan_in)
        kw, kb = jax.random.split(k)
        w = jax.random.uniform(kw, (fan_in, fan_out), jnp.float32, -bound, bound)
        b = jax.random.uniform(kb, (fan_out,), jnp.float32, -bound, bound)
        return w, b

    user_table = jax.random.normal(ks[0], (len_userdic, USER_EMB_DIM), jnp.float32)
    user_table = user_table.at[0].set(0.0)   # padding_idx=0
    text_table = jax.random.normal(ks[1], (len_textdic, TEXT_EMB_DIM), jnp.float32)
    text_table = text_table.at[0].set(0.0)   # padding_idx=0

    w_time, b_time = lin(ks[2], TIMEDIM, TIME_EMB_DIM)
    w_enc, b_enc = lin(ks[3], USER_EMB_DIM + TIME_EMB_DIM, ENC_DIM)
    w_mlp, b_mlp = lin(ks[4], TEXT_EMB_DIM + ENC_DIM + NUM4_DIM + TEXTNUM_DIM, FINAL_DIM)
    w_mlp1, b_mlp1 = lin(ks[5], FINAL_DIM, OUT_DIM)

    return dict(user_table=user_table, text_table=text_table,
                w_time=w_time, b_time=b_time,
                w_enc=w_enc, b_enc=b_enc,
                w_mlp=w_mlp, b_mlp=b_mlp,
                w_mlp1=w_mlp1, b_mlp1=b_mlp1)


def _round_up(x, m):
    return ((x + m - 1) // m) * m


def ed_model_forward(params, sen, user, time, seq_lengths, num4, textnum):
    B = sen.shape[0]
    f32 = jnp.float32

    # ---------------- XLA-side glue (gathers, reductions, weight prep) -------
    user_emb = params["user_table"][user]                       # (B, 50)
    # sentence embedding: gather + seq-sum + multiply by 1/len (wrapper side).
    sen_sum = jnp.sum(params["text_table"][sen], axis=1)        # (B, 50)
    inv_len = (1.0 / seq_lengths.astype(f32))[:, None]          # (B, 1)
    sen_emb = sen_sum * inv_len                                 # (B, 50)

    # Packed input slab: [user_emb | time | 0 ... | num4 | textnum | sen | 0...]
    x = jnp.zeros((B, PACKED_DIM), f32)
    x = x.at[:, :USER_EMB_DIM].set(user_emb)
    x = x.at[:, USER_EMB_DIM:SEG1_REAL].set(time.astype(f32))
    x = x.at[:, SEG:SEG + NUM4_DIM].set(num4.astype(f32))
    x = x.at[:, SEG + NUM4_DIM:SEG + NUM4_DIM + TEXTNUM_DIM].set(textnum.astype(f32))
    x = x.at[:, SEG + NUM4_DIM + TEXTNUM_DIM:SEG + SEG2_REAL].set(sen_emb)

    # Fold time Linear into the encoder: no nonlinearity between them.
    w_enc_u = params["w_enc"][:USER_EMB_DIM]                    # (50, 40)
    w_enc_t = params["w_enc"][USER_EMB_DIM:]                    # (10, 40)
    w_fold = params["w_time"] @ w_enc_t                         # (33, 40)
    b_fold = params["b_time"] @ w_enc_t + params["b_enc"]       # (40,)
    w1 = jnp.zeros((SEG, ENC_DIM), f32)
    w1 = w1.at[:USER_EMB_DIM].set(w_enc_u)
    w1 = w1.at[USER_EMB_DIM:SEG1_REAL].set(w_fold)              # (128, 40)
    b1 = b_fold[None, :]                                        # (1, 40)

    # Split / pad the big MLP weight: rows are [enc(40)|num4(17)|textnum(5)|sen(50)].
    w2e = params["w_mlp"][:ENC_DIM]                             # (40, 64)
    w2r = jnp.zeros((SEG, FINAL_DIM), f32)
    w2r = w2r.at[:SEG2_REAL].set(params["w_mlp"][ENC_DIM:])     # (128, 64)
    b2 = params["b_mlp"][None, :]                               # (1, 64)

    w3 = params["w_mlp1"]                                       # (64, 3)
    b3 = params["b_mlp1"][None, :]                              # (1, 3)

    # ---------------- batch tiling -------------------------------------------
    # TODO(synk): bf16 embedding tables would halve the wrapper-side gather
    # traffic on v6e/v7x; kept f32 here to preserve the 1e-4 tolerance.
    tile_b = min(1024, _round_up(B, 8))          # conservative for v7x 64 MiB VMEM
    b_pad = _round_up(B, tile_b)
    if b_pad != B:
        x = jnp.pad(x, ((0, b_pad - B), (0, 0)))
    grid = (b_pad // tile_b,)

    def keep(i):          # weights/biases stay resident across grid steps
        return (0, 0)

    flops_per_row = 2 * (SEG * ENC_DIM + ENC_DIM * FINAL_DIM
                         + SEG * FINAL_DIM + FINAL_DIM * OUT_DIM)
    weight_bytes = 4 * (SEG * ENC_DIM + ENC_DIM + ENC_DIM * FINAL_DIM
                        + SEG * FINAL_DIM + FINAL_DIM + FINAL_DIM * OUT_DIM + OUT_DIM)
    cost = pl.CostEstimate(
        flops=flops_per_row * b_pad,
        transcendentals=0,
        bytes_accessed=b_pad * PACKED_DIM * 4 + b_pad * OUT_DIM * 4 + weight_bytes,
    )

    out = pl.pallas_call(
        edmodel_kernel,
        out_shape=jax.ShapeDtypeStruct((b_pad, OUT_DIM), f32),
        grid=grid,
        in_specs=[
            pl.BlockSpec((tile_b, PACKED_DIM), lambda i: (i, 0)),   # x
            pl.BlockSpec((SEG, ENC_DIM), keep),                     # w1
            pl.BlockSpec((1, ENC_DIM), keep),                       # b1
            pl.BlockSpec((ENC_DIM, FINAL_DIM), keep),               # w2e
            pl.BlockSpec((SEG, FINAL_DIM), keep),                   # w2r
            pl.BlockSpec((1, FINAL_DIM), keep),                     # b2
            pl.BlockSpec((FINAL_DIM, OUT_DIM), keep),               # w3
            pl.BlockSpec((1, OUT_DIM), keep),                       # b3
        ],
        out_specs=pl.BlockSpec((tile_b, OUT_DIM), lambda i: (i, 0)),
        compiler_params=pltpu.CompilerParams(
            dimension_semantics=("parallel",),
            vmem_limit_bytes=48 * 1024 * 1024,
        ),
        cost_estimate=cost,
    )(x, w1, b1, w2e, w2r, b2, w3, b3)

    return out[:B]


def ed_model_reference(params, sen, user, time, seq_lengths, num4, textnum):
    # Pure-JAX reference mirroring the PyTorch forward (eval mode).
    user_emb = params["user_table"][user]
    time_emb = time @ params["w_time"] + params["b_time"]
    inp = jnp.concatenate([user_emb, time_emb], axis=1)
    enc = jax.nn.relu(inp @ params["w_enc"] + params["b_enc"])
    enc = jnp.concatenate([enc, num4, textnum], axis=1)
    text_emb = params["text_table"][sen]
    sen_e = jnp.sum(text_emb, axis=1) / seq_lengths.astype(jnp.float32)[:, None]
    ut = jnp.concatenate([enc, sen_e], axis=1)
    h = jax.nn.relu(ut @ params["w_mlp"] + params["b_mlp"])
    return h @ params["w_mlp1"] + params["b_mlp1"]


if __name__ == "__main__":
    # TODO(synk): Dropout(0.3) layers are implemented as eval-mode identity
    # (stochastic training-mode dropout is not reproduced in-kernel).
    key = jax.random.PRNGKey(0)
    k_p, k_sen, k_user, k_time, k_len, k_n4, k_tn = jax.random.split(key, 7)

    LEN_USERDIC, LEN_TEXTDIC = 100, 200
    B, L = 8, 12

    params = init_params(k_p, LEN_USERDIC, LEN_TEXTDIC)

    sen = jax.random.randint(k_sen, (B, L), 0, LEN_TEXTDIC, dtype=jnp.int32)
    user = jax.random.randint(k_user, (B,), 1, LEN_USERDIC, dtype=jnp.int32)
    time = jax.random.normal(k_time, (B, TIMEDIM), jnp.float32)
    seq_lengths = jax.random.randint(k_len, (B,), 1, L + 1).astype(jnp.float32)
    num4 = jax.random.normal(k_n4, (B, NUM4_DIM), jnp.float32)
    textnum = jax.random.normal(k_tn, (B, TEXTNUM_DIM), jnp.float32)

    out = ed_model_forward(params, sen, user, time, seq_lengths, num4, textnum)
    out = jax.block_until_ready(out)

    ref = ed_model_reference(params, sen, user, time, seq_lengths, num4, textnum)
    np.testing.assert_allclose(np.asarray(out), np.asarray(ref), rtol=1e-4, atol=1e-4)

    assert out.shape == (B, OUT_DIM)
    print("KERNEL_OK")
</pallas_src>

<mosaic_0001>
module attributes {stable_mosaic.version = 11 : i64} {
  func.func @edmodel_kernel(%arg0: i32, %arg1: memref<8x256xf32, #tpu.memory_space<vmem>>, %arg2: memref<128x40xf32, #tpu.memory_space<vmem>>, %arg3: memref<1x40xf32, #tpu.memory_space<vmem>>, %arg4: memref<40x64xf32, #tpu.memory_space<vmem>>, %arg5: memref<128x64xf32, #tpu.memory_space<vmem>>, %arg6: memref<1x64xf32, #tpu.memory_space<vmem>>, %arg7: memref<64x3xf32, #tpu.memory_space<vmem>>, %arg8: memref<1x3xf32, #tpu.memory_space<vmem>>, %arg9: memref<8x3xf32, #tpu.memory_space<vmem>>) attributes {dimension_semantics = [#tpu.dimension_semantics<parallel>], iteration_bounds = array<i64: 1>, scalar_prefetch = 0 : i64, scratch_operands = 0 : i64, tpu.core_type = #tpu.core_type<tc>, window_params = [{transform_indices = @transform_0, window_bounds = array<i64: 8, 256>}, {pipeline_mode = #tpu.pipeline_mode<synchronous>, transform_indices = @transform_1, window_bounds = array<i64: 128, 40>}, {pipeline_mode = #tpu.pipeline_mode<synchronous>, transform_indices = @transform_2, window_bounds = array<i64: 1, 40>}, {pipeline_mode = #tpu.pipeline_mode<synchronous>, transform_indices = @transform_3, window_bounds = array<i64: 40, 64>}, {pipeline_mode = #tpu.pipeline_mode<synchronous>, transform_indices = @transform_4, window_bounds = array<i64: 128, 64>}, {pipeline_mode = #tpu.pipeline_mode<synchronous>, transform_indices = @transform_5, window_bounds = array<i64: 1, 64>}, {pipeline_mode = #tpu.pipeline_mode<synchronous>, transform_indices = @transform_6, window_bounds = array<i64: 64, 3>}, {pipeline_mode = #tpu.pipeline_mode<synchronous>, transform_indices = @transform_7, window_bounds = array<i64: 1, 3>}, {transform_indices = @transform_8, window_bounds = array<i64: 8, 3>}]} {
    %c0 = arith.constant 0 : index
    %c0_0 = arith.constant 0 : index
    %0 = vector.load %arg1[%c0, %c0_0] : memref<8x256xf32, #tpu.memory_space<vmem>>, vector<8x128xf32>
    %c0_1 = arith.constant 0 : index
    %c0_2 = arith.constant 0 : index
    %1 = vector.load %arg2[%c0_1, %c0_2] : memref<128x40xf32, #tpu.memory_space<vmem>>, vector<128x40xf32>
    %cst = arith.constant dense<0.000000e+00> : vector<8x40xf32>
    %2 = tpu.matmul %0, %1, %cst {dimension_numbers = #tpu.dot_dimension_numbers<[1], [0], [0], [1], [0, 0, 1, 1], [], []>} : vector<8x128xf32>, vector<128x40xf32>, vector<8x40xf32> -> vector<8x40xf32>
    %c0_3 = arith.constant 0 : index
    %c0_4 = arith.constant 0 : index
    %3 = vector.load %arg3[%c0_3, %c0_4] : memref<1x40xf32, #tpu.memory_space<vmem>>, vector<1x40xf32>
    %4 = vector.broadcast %3 : vector<1x40xf32> to vector<8x40xf32>
    %5 = arith.addf %2, %4 : vector<8x40xf32>
    %cst_5 = arith.constant 0.000000e+00 : f32
    %6 = vector.broadcast %cst_5 : f32 to vector<8x40xf32>
    %7 = arith.maximumf %5, %6 : vector<8x40xf32>
    %c0_6 = arith.constant 0 : index
    %c0_7 = arith.constant 0 : index
    %8 = vector.load %arg4[%c0_6, %c0_7] : memref<40x64xf32, #tpu.memory_space<vmem>>, vector<40x64xf32>
    %cst_8 = arith.constant dense<0.000000e+00> : vector<8x64xf32>
    %9 = tpu.matmul %7, %8, %cst_8 {dimension_numbers = #tpu.dot_dimension_numbers<[1], [0], [0], [1], [0, 0, 1, 1], [], []>} : vector<8x40xf32>, vector<40x64xf32>, vector<8x64xf32> -> vector<8x64xf32>
    %c0_9 = arith.constant 0 : index
    %c128 = arith.constant 128 : index
    %10 = vector.load %arg1[%c0_9, %c128] : memref<8x256xf32, #tpu.memory_space<vmem>>, vector<8x128xf32>
    %c0_10 = arith.constant 0 : index
    %c0_11 = arith.constant 0 : index
    %11 = vector.load %arg5[%c0_10, %c0_11] : memref<128x64xf32, #tpu.memory_space<vmem>>, vector<128x64xf32>
    %cst_12 = arith.constant dense<0.000000e+00> : vector<8x64xf32>
    %12 = tpu.matmul %10, %11, %cst_12 {dimension_numbers = #tpu.dot_dimension_numbers<[1], [0], [0], [1], [0, 0, 1, 1], [], []>} : vector<8x128xf32>, vector<128x64xf32>, vector<8x64xf32> -> vector<8x64xf32>
    %13 = arith.addf %9, %12 : vector<8x64xf32>
    %c0_13 = arith.constant 0 : index
    %c0_14 = arith.constant 0 : index
    %14 = vector.load %arg6[%c0_13, %c0_14] : memref<1x64xf32, #tpu.memory_space<vmem>>, vector<1x64xf32>
    %15 = vector.broadcast %14 : vector<1x64xf32> to vector<8x64xf32>
    %16 = arith.addf %13, %15 : vector<8x64xf32>
    %cst_15 = arith.constant 0.000000e+00 : f32
    %17 = vector.broadcast %cst_15 : f32 to vector<8x64xf32>
    %18 = arith.maximumf %16, %17 : vector<8x64xf32>
    %c0_16 = arith.constant 0 : index
    %c0_17 = arith.constant 0 : index
    %19 = vector.load %arg7[%c0_16, %c0_17] : memref<64x3xf32, #tpu.memory_space<vmem>>, vector<64x3xf32>
    %cst_18 = arith.constant dense<0.000000e+00> : vector<8x3xf32>
    %20 = tpu.matmul %18, %19, %cst_18 {dimension_numbers = #tpu.dot_dimension_numbers<[1], [0], [0], [1], [0, 0, 1, 1], [], []>} : vector<8x64xf32>, vector<64x3xf32>, vector<8x3xf32> -> vector<8x3xf32>
    %c0_19 = arith.constant 0 : index
    %c0_20 = arith.constant 0 : index
    %21 = vector.load %arg8[%c0_19, %c0_20] : memref<1x3xf32, #tpu.memory_space<vmem>>, vector<1x3xf32>
    %22 = vector.broadcast %21 : vector<1x3xf32> to vector<8x3xf32>
    %23 = arith.addf %20, %22 : vector<8x3xf32>
    %c0_21 = arith.constant 0 : index
    %c0_22 = arith.constant 0 : index
    %24 = vector.load %arg9[%c0_21, %c0_22] : memref<8x3xf32, #tpu.memory_space<vmem>>, vector<8x3xf32>
    tpu.vector_store %arg9[%c0_21, %c0_22], %23 {strides = array<i32>} : memref<8x3xf32, #tpu.memory_space<vmem>>, vector<8x3xf32>,
    return
  }
  func.func @transform_0(%arg0: i32) -> (i32, i32) {
    %c0_i32 = arith.constant 0 : i32
    %c0_i32_0 = arith.constant 0 : i32
    return %arg0, %c0_i32 : i32, i32
  }
  func.func @transform_1(%arg0: i32) -> (i32, i32) {
    %c0_i32 = arith.constant 0 : i32
    %c0_i32_0 = arith.constant 0 : i32
    %c0_i32_1 = arith.constant 0 : i32
    return %c0_i32, %c0_i32_0 : i32, i32
  }
  func.func @transform_2(%arg0: i32) -> (i32, i32) {
    %c0_i32 = arith.constant 0 : i32
    %c0_i32_0 = arith.constant 0 : i32
    %c0_i32_1 = arith.constant 0 : i32
    return %c0_i32, %c0_i32_0 : i32, i32
  }
  func.func @transform_3(%arg0: i32) -> (i32, i32) {
    %c0_i32 = arith.constant 0 : i32
    %c0_i32_0 = arith.constant 0 : i32
    %c0_i32_1 = arith.constant 0 : i32
    return %c0_i32, %c0_i32_0 : i32, i32
  }
  func.func @transform_4(%arg0: i32) -> (i32, i32) {
    %c0_i32 = arith.constant 0 : i32
    %c0_i32_0 = arith.constant 0 : i32
    %c0_i32_1 = arith.constant 0 : i32
    return %c0_i32, %c0_i32_0 : i32, i32
  }
  func.func @transform_5(%arg0: i32) -> (i32, i32) {
    %c0_i32 = arith.constant 0 : i32
    %c0_i32_0 = arith.constant 0 : i32
    %c0_i32_1 = arith.constant 0 : i32
    return %c0_i32, %c0_i32_0 : i32, i32
  }
  func.func @transform_6(%arg0: i32) -> (i32, i32) {
    %c0_i32 = arith.constant 0 : i32
    %c0_i32_0 = arith.constant 0 : i32
    %c0_i32_1 = arith.constant 0 : i32
    return %c0_i32, %c0_i32_0 : i32, i32
  }
  func.func @transform_7(%arg0: i32) -> (i32, i32) {
    %c0_i32 = arith.constant 0 : i32
    %c0_i32_0 = arith.constant 0 : i32
    %c0_i32_1 = arith.constant 0 : i32
    return %c0_i32, %c0_i32_0 : i32, i32
  }
  func.func @transform_8(%arg0: i32) -> (i32, i32) {
    %c0_i32 = arith.constant 0 : i32
    %c0_i32_0 = arith.constant 0 : i32
    return %arg0, %c0_i32 : i32, i32
  }
}

</mosaic_0001>

<llo_original>
// kernel: tpu_custom_call.1
$region0: #{tpu_custom_call.1}
  #allocation0 [shape = 'u32[]', space=smem, size = 0x4, offset = 0x4, fixed_abs, tag = 'smem constant byte address 0x4 - core index']
  #allocation1 [shape = 'u32[144,128]{1,0:T(1,128)}', space=vmem, size = 0x12000, scoped, tag = 'internal scratch']
  %s0 = inlined_call_operand.vmem [shape: f32[8,256], index: 0, kind: input, shape index: {}]
  %s1 = inlined_call_operand.vmem [shape: f32[128,40], index: 1, kind: input, shape index: {}]
  %s2 = inlined_call_operand.vmem [shape: f32[1,40], index: 2, kind: input, shape index: {}]
  %s3 = inlined_call_operand.vmem [shape: f32[40,64], index: 3, kind: input, shape index: {}]
  %s4 = inlined_call_operand.vmem [shape: f32[128,64], index: 4, kind: input, shape index: {}]
  %s5 = inlined_call_operand.vmem [shape: f32[1,64], index: 5, kind: input, shape index: {}]
  %s6 = inlined_call_operand.vmem [shape: f32[64,3], index: 6, kind: input, shape index: {}]
  %s7 = inlined_call_operand.vmem [shape: f32[1,3], index: 7, kind: input, shape index: {}]
  %s8 = inlined_call_operand.vmem [shape: f32[8,3], index: 8, kind: output, shape index: {}]
  %s9 = sld [smem:[#allocation0]]
  $region42: #{tpu_custom_call.1} parent=0
    _
  %s11 = ssub.s32 1, %s9
  %s12 = scalar_select 0, %s11, %s9
  // Predicated region
  $region2: #{tpu_custom_call.1} parent=0 // pred_check
    _
  $region3: #{tpu_custom_call.1} parent=0 // pred_check_branch
    %14 = sbr.rel (0) target = $region5
  $region4: #{tpu_custom_call.1} parent=0 // pred_region
    _
  $region5: #{tpu_custom_call.1} parent=0 // pred_fallthru
    _
  // Predicated region
  $region6: #{tpu_custom_call.1} parent=0 // pred_check
    _
  $region7: #{tpu_custom_call.1} parent=0 // pred_check_branch
    %16 = sbr.rel (0) target = $region9
  $region8: #{tpu_custom_call.1} parent=0 // pred_region
    _
  $region9: #{tpu_custom_call.1} parent=0 // pred_fallthru
    _
  // Predicated region
  $region10: #{tpu_custom_call.1} parent=0 // pred_check
    _
  $region11: #{tpu_custom_call.1} parent=0 // pred_check_branch
    %18 = sbr.rel (0) target = $region13
  $region12: #{tpu_custom_call.1} parent=0 // pred_region
    _
  $region13: #{tpu_custom_call.1} parent=0 // pred_fallthru
    _
  // Predicated region
  $region14: #{tpu_custom_call.1} parent=0 // pred_check
    _
  $region15: #{tpu_custom_call.1} parent=0 // pred_check_branch
    %20 = sbr.rel (0) target = $region17
  $region16: #{tpu_custom_call.1} parent=0 // pred_region
    _
  $region17: #{tpu_custom_call.1} parent=0 // pred_fallthru
    _
  // Predicated region
  $region18: #{tpu_custom_call.1} parent=0 // pred_check
    _
  $region19: #{tpu_custom_call.1} parent=0 // pred_check_branch
    %22 = sbr.rel (0) target = $region21
  $region20: #{tpu_custom_call.1} parent=0 // pred_region
    _
  $region21: #{tpu_custom_call.1} parent=0 // pred_fallthru
    _
  // Predicated region
  $region22: #{tpu_custom_call.1} parent=0 // pred_check
    _
  $region23: #{tpu_custom_call.1} parent=0 // pred_check_branch
    %24 = sbr.rel (0) target = $region25
  $region24: #{tpu_custom_call.1} parent=0 // pred_region
    _
  $region25: #{tpu_custom_call.1} parent=0 // pred_fallthru
    _
  // Predicated region
  $region26: #{tpu_custom_call.1} parent=0 // pred_check
    _
  $region27: #{tpu_custom_call.1} parent=0 // pred_check_branch
    %26 = sbr.rel (0) target = $region29
  $region28: #{tpu_custom_call.1} parent=0 // pred_region
    _
  $region29: #{tpu_custom_call.1} parent=0 // pred_fallthru
    _
  // Predicated region
  $region30: #{tpu_custom_call.1} parent=0 // pred_check
    _
  $region31: #{tpu_custom_call.1} parent=0 // pred_check_branch
    %28 = sbr.rel (0) target = $region33
  $region32: #{tpu_custom_call.1} parent=0 // pred_region
    _
  $region33: #{tpu_custom_call.1} parent=0 // pred_fallthru
    _
  %v29 = vld [vmem:[%s0] sm:$0xff]
  %v30 = vld [vmem:[%s1] sm:$0xff]
  %v31 = vld [vmem:[%s1 + $0x8] sm:$0xff]
  %v32 = vld [vmem:[%s1 + $0x10] sm:$0xff]
  %v33 = vld [vmem:[%s1 + $0x18] sm:$0xff]
  %v34 = vld [vmem:[%s1 + $0x20] sm:$0xff]
  %v35 = vld [vmem:[%s1 + $0x28] sm:$0xff]
  %v36 = vld [vmem:[%s1 + $0x30] sm:$0xff]
  %v37 = vld [vmem:[%s1 + $0x38] sm:$0xff]
  %v38 = vld [vmem:[%s1 + $0x40] sm:$0xff]
  %v39 = vld [vmem:[%s1 + $0x48] sm:$0xff]
  %v40 = vld [vmem:[%s1 + $0x50] sm:$0xff]
  %v41 = vld [vmem:[%s1 + $0x58] sm:$0xff]
  %v42 = vld [vmem:[%s1 + $0x60] sm:$0xff]
  %v43 = vld [vmem:[%s1 + $0x68] sm:$0xff]
  %v44 = vld [vmem:[%s1 + $0x70] sm:$0xff]
  %v45 = vld [vmem:[%s1 + $0x78] sm:$0xff]
  %v46 = vld [vmem:[%s2] sm:$0x1]
  %v48 = vlaneseq
  %v49 = vshrl.u32 %v48, 7
  %v50 = vsub.s32 0, %v49
  %v51 = vrot.slane %v46, %v50
  %53 = vmatprep.subr.mxu0 0.0
  %54 = vmatpush1.msra.mxu0 %v30
  %55 = vmatprep.subr.mxu0 0.0
  %56 = vmatpush1.msra.mxu0 %v31
  %57 = vmatprep.subr.mxu0 0.0
  %58 = vmatpush1.msra.mxu0 %v32
  %59 = vmatprep.subr.mxu0 0.0
  %60 = vmatpush1.msra.mxu0 %v33
  %61 = vmatprep.subr.mxu0 0.0
  %62 = vmatpush1.msra.mxu0 %v34
  %63 = vmatprep.subr.mxu0 0.0
  %64 = vmatpush1.msra.mxu0 %v35
  %65 = vmatprep.subr.mxu0 0.0
  %66 = vmatpush1.msra.mxu0 %v36
  %67 = vmatprep.subr.mxu0 0.0
  %68 = vmatpush1.msra.mxu0 %v37
  %69 = vmatprep.subr.mxu0 0.0
  %70 = vmatpush1.msra.mxu0 %v38
  %71 = vmatprep.subr.mxu0 0.0
  %72 = vmatpush1.msra.mxu0 %v39
  %73 = vmatprep.subr.mxu0 0.0
  %74 = vmatpush1.msra.mxu0 %v40
  %75 = vmatprep.subr.mxu0 0.0
  %76 = vmatpush1.msra.mxu0 %v41
  %77 = vmatprep.subr.mxu0 0.0
  %78 = vmatpush1.msra.mxu0 %v42
  %79 = vmatprep.subr.mxu0 0.0
  %80 = vmatpush1.msra.mxu0 %v43
  %81 = vmatprep.subr.mxu0 0.0
  %82 = vmatpush1.msra.mxu0 %v44
  %83 = vmatprep.subr.mxu0 0.0
  %84 = vmatpush1.msra.mxu0 %v45
  %85 = vmatprep.subr.mxu0 0.0
  %86 = vmatpush1.msra.mxu0 0.0
  %87 = vmatprep.subr.mxu0 0.0
  %88 = vmatpush1.msra.mxu0 0.0
  %89 = vmatprep.subr.mxu0 0.0
  %90 = vmatpush1.msra.mxu0 0.0
  %91 = vmatprep.subr.mxu0 0.0
  %92 = vmatpush1.msra.mxu0 0.0
  %93 = vmatprep.subr.mxu0 0.0
  %94 = vmatpush1.msra.mxu0 0.0
  %95 = vmatprep.subr.mxu0 0.0
  %96 = vmatpush1.msra.mxu0 0.0
  %97 = vmatprep.subr.mxu0 0.0
  %98 = vmatpush1.msra.mxu0 0.0
  %99 = vmatprep.subr.mxu0 0.0
  %100 = vmatpush1.msra.mxu0 0.0
  %101 = vmatprep.subr.mxu0 0.0
  %102 = vmatpush1.msra.mxu0 0.0
  %103 = vmatprep.subr.mxu0 0.0
  %104 = vmatpush1.msra.mxu0 0.0
  %105 = vmatprep.subr.mxu0 0.0
  %106 = vmatpush1.msra.mxu0 0.0
  %107 = vmatprep.subr.mxu0 0.0
  %108 = vmatpush1.msra.mxu0 0.0
  %109 = vmatprep.subr.mxu0 0.0
  %110 = vmatpush1.msra.mxu0 0.0
  %111 = vmatprep.subr.mxu0 0.0
  %112 = vmatpush1.msra.mxu0 0.0
  %113 = vmatprep.subr.mxu0 0.0
  %114 = vmatpush1.msra.mxu0 0.0
  %115 = vmatprep.subr.mxu0 0.0
  %116 = vmatpush1.msra.mxu0 0.0
  %117 = vmatprep.mubr.f32.mxu0 0.0
  %118 = vmatmul.mubr.f32.gmra.mrb[0].mxu0 %v29
  %v119 = vpop.f32.mrb[0].mxu0
  %v120 = vadd.f32 %v51, %v119
  %v121 = vpop.f32.mrb[0].mxu0
  %122 = vdwg.mxu0
  %v123 = vmax.f32 %v120, 0.0
  %v124 = vld [vmem:[%s3] sm:$0xff]
  %v125 = vld [vmem:[%s3 + $0x8] sm:$0xff]
  %v126 = vld [vmem:[%s3 + $0x10] sm:$0xff]
  %v127 = vld [vmem:[%s3 + $0x18] sm:$0xff]
  %v128 = vld [vmem:[%s3 + $0x20] sm:$0xff]
  %v129 = vld [vmem:[%s0 + $0x8] sm:$0xff]
  %v130 = vld [vmem:[%s4] sm:$0xff]
  %v131 = vld [vmem:[%s4 + $0x8] sm:$0xff]
  %v132 = vld [vmem:[%s4 + $0x10] sm:$0xff]
  %v133 = vld [vmem:[%s4 + $0x18] sm:$0xff]
  %v134 = vld [vmem:[%s4 + $0x20] sm:$0xff]
  %v135 = vld [vmem:[%s4 + $0x28] sm:$0xff]
  %v136 = vld [vmem:[%s4 + $0x30] sm:$0xff]
  %v137 = vld [vmem:[%s4 + $0x38] sm:$0xff]
  %v138 = vld [vmem:[%s4 + $0x40] sm:$0xff]
  %v139 = vld [vmem:[%s4 + $0x48] sm:$0xff]
  %v140 = vld [vmem:[%s4 + $0x50] sm:$0xff]
  %v141 = vld [vmem:[%s4 + $0x58] sm:$0xff]
  %v142 = vld [vmem:[%s4 + $0x60] sm:$0xff]
  %v143 = vld [vmem:[%s4 + $0x68] sm:$0xff]
  %v144 = vld [vmem:[%s4 + $0x70] sm:$0xff]
  %v145 = vld [vmem:[%s4 + $0x78] sm:$0xff]
  %146 = vmatprep.subr.mxu0 0.0
  %147 = vmatpush1.msra.mxu0 %v130
  %148 = vmatprep.subr.mxu0 0.0
  %149 = vmatpush1.msra.mxu0 %v131
  %150 = vmatprep.subr.mxu0 0.0
  %151 = vmatpush1.msra.mxu0 %v132
  %152 = vmatprep.subr.mxu0 0.0
  %153 = vmatpush1.msra.mxu0 %v133
  %154 = vmatprep.subr.mxu0 0.0
  %155 = vmatpush1.msra.mxu0 %v134
  %156 = vmatprep.subr.mxu0 0.0
  %157 = vmatpush1.msra.mxu0 %v135
  %158 = vmatprep.subr.mxu0 0.0
  %159 = vmatpush1.msra.mxu0 %v136
  %160 = vmatprep.subr.mxu0 0.0
  %161 = vmatpush1.msra.mxu0 %v137
  %162 = vmatprep.subr.mxu0 0.0
  %163 = vmatpush1.msra.mxu0 %v138
  %164 = vmatprep.subr.mxu0 0.0
  %165 = vmatpush1.msra.mxu0 %v139
  %166 = vmatprep.subr.mxu0 0.0
  %167 = vmatpush1.msra.mxu0 %v140
  %168 = vmatprep.subr.mxu0 0.0
  %169 = vmatpush1.msra.mxu0 %v141
  %170 = vmatprep.subr.mxu0 0.0
  %171 = vmatpush1.msra.mxu0 %v142
  %172 = vmatprep.subr.mxu0 0.0
  %173 = vmatpush1.msra.mxu0 %v143
  %174 = vmatprep.subr.mxu0 0.0
  %175 = vmatpush1.msra.mxu0 %v144
  %176 = vmatprep.subr.mxu0 0.0
  %177 = vmatpush1.msra.mxu0 %v145
  %178 = vmatprep.subr.mxu0 0.0
  %179 = vmatpush1.msra.mxu0 0.0
  %180 = vmatprep.subr.mxu0 0.0
  %181 = vmatpush1.msra.mxu0 0.0
  %182 = vmatprep.subr.mxu0 0.0
  %183 = vmatpush1.msra.mxu0 0.0
  %184 = vmatprep.subr.mxu0 0.0
  %185 = vmatpush1.msra.mxu0 0.0
  %186 = vmatprep.subr.mxu0 0.0
  %187 = vmatpush1.msra.mxu0 0.0
  %188 = vmatprep.subr.mxu0 0.0
  %189 = vmatpush1.msra.mxu0 0.0
  %190 = vmatprep.subr.mxu0 0.0
  %191 = vmatpush1.msra.mxu0 0.0
  %192 = vmatprep.subr.mxu0 0.0
  %193 = vmatpush1.msra.mxu0 0.0
  %194 = vmatprep.subr.mxu0 0.0
  %195 = vmatpush1.msra.mxu0 0.0
  %196 = vmatprep.subr.mxu0 0.0
  %197 = vmatpush1.msra.mxu0 0.0
  %198 = vmatprep.subr.mxu0 0.0
  %199 = vmatpush1.msra.mxu0 0.0
  %200 = vmatprep.subr.mxu0 0.0
  %201 = vmatpush1.msra.mxu0 0.0
  %202 = vmatprep.subr.mxu0 0.0
  %203 = vmatpush1.msra.mxu0 0.0
  %204 = vmatprep.subr.mxu0 0.0
  %205 = vmatpush1.msra.mxu0 0.0
  %206 = vmatprep.subr.mxu0 0.0
  %207 = vmatpush1.msra.mxu0 0.0
  %208 = vmatprep.subr.mxu0 0.0
  %209 = vmatpush1.msra.mxu0 0.0
  %210 = vmatprep.mubr.f32.mxu0 0.0
  %211 = vmatmul.mubr.f32.gmra.mrb[0].mxu0 %v129
  %v212 = vpop.f32.mrb[0].mxu0
  %v213 = vadd.f32 0.0, %v212
  %v214 = vpop.f32.mrb[0].mxu0
  %215 = vdwg.mxu0
  %vm216 = vcmask 326656
  %v218 = vsel %vm216, %v123, 0
  %220 = vmatprep.subr.mxu0 0.0
  %221 = vmatpush1.msra.mxu0 %v124
  %222 = vmatprep.subr.mxu0 0.0
  %223 = vmatpush1.msra.mxu0 %v125
  %224 = vmatprep.subr.mxu0 0.0
  %225 = vmatpush1.msra.mxu0 %v126
  %226 = vmatprep.subr.mxu0 0.0
  %227 = vmatpush1.msra.mxu0 %v127
  %228 = vmatprep.subr.mxu0 0.0
  %229 = vmatpush1.msra.mxu0 %v128
  %230 = vmatprep.subr.mxu0 0.0
  %231 = vmatpush1.msra.mxu0 0.0
  %232 = vmatprep.subr.mxu0 0.0
  %233 = vmatpush1.msra.mxu0 0.0
  %234 = vmatprep.subr.mxu0 0.0
  %235 = vmatpush1.msra.mxu0 0.0
  %236 = vmatprep.subr.mxu0 0.0
  %237 = vmatpush1.msra.mxu0 0.0
  %238 = vmatprep.subr.mxu0 0.0
  %239 = vmatpush1.msra.mxu0 0.0
  %240 = vmatprep.subr.mxu0 0.0
  %241 = vmatpush1.msra.mxu0 0.0
  %242 = vmatprep.subr.mxu0 0.0
  %243 = vmatpush1.msra.mxu0 0.0
  %244 = vmatprep.subr.mxu0 0.0
  %245 = vmatpush1.msra.mxu0 0.0
  %246 = vmatprep.subr.mxu0 0.0
  %247 = vmatpush1.msra.mxu0 0.0
  %248 = vmatprep.subr.mxu0 0.0
  %249 = vmatpush1.msra.mxu0 0.0
  %250 = vmatprep.subr.mxu0 0.0
  %251 = vmatpush1.msra.mxu0 0.0
  %252 = vmatprep.subr.mxu0 0.0
  %253 = vmatpush1.msra.mxu0 0.0
  %254 = vmatprep.subr.mxu0 0.0
  %255 = vmatpush1.msra.mxu0 0.0
  %256 = vmatprep.subr.mxu0 0.0
  %257 = vmatpush1.msra.mxu0 0.0
  %258 = vmatprep.subr.mxu0 0.0
  %259 = vmatpush1.msra.mxu0 0.0
  %260 = vmatprep.subr.mxu0 0.0
  %261 = vmatpush1.msra.mxu0 0.0
  %262 = vmatprep.subr.mxu0 0.0
  %263 = vmatpush1.msra.mxu0 0.0
  %264 = vmatprep.subr.mxu0 0.0
  %265 = vmatpush1.msra.mxu0 0.0
  %266 = vmatprep.subr.mxu0 0.0
  %267 = vmatpush1.msra.mxu0 0.0
  %268 = vmatprep.subr.mxu0 0.0
  %269 = vmatpush1.msra.mxu0 0.0
  %270 = vmatprep.subr.mxu0 0.0
  %271 = vmatpush1.msra.mxu0 0.0
  %272 = vmatprep.subr.mxu0 0.0
  %273 = vmatpush1.msra.mxu0 0.0
  %274 = vmatprep.subr.mxu0 0.0
  %275 = vmatpush1.msra.mxu0 0.0
  %276 = vmatprep.subr.mxu0 0.0
  %277 = vmatpush1.msra.mxu0 0.0
  %278 = vmatprep.subr.mxu0 0.0
  %279 = vmatpush1.msra.mxu0 0.0
  %280 = vmatprep.subr.mxu0 0.0
  %281 = vmatpush1.msra.mxu0 0.0
  %282 = vmatprep.subr.mxu0 0.0
  %283 = vmatpush1.msra.mxu0 0.0
  %284 = vmatprep.mubr.f32.mxu0 0.0
  %285 = vmatmul.mubr.f32.gmra.mrb[0].mxu0 %v218
  %v286 = vpop.f32.mrb[0].mxu0
  %v287 = vadd.f32 %v213, %v286
  %v288 = vpop.f32.mrb[0].mxu0
  %289 = vdwg.mxu0
  %v290 = vld [vmem:[%s5] sm:$0x1]
  %v292 = vlaneseq
  %v293 = vshrl.u32 %v292, 7
  %v294 = vsub.s32 0, %v293
  %v295 = vrot.slane %v290, %v294
  %v297 = vadd.f32 %v287, %v295
  %v298 = vmax.f32 %v297, 0.0
  %v299 = vld [vmem:[%s6] sm:$0xff]
  %v300 = vld [vmem:[%s6 + $0x8] sm:$0xff]
  %v301 = vld [vmem:[%s6 + $0x10] sm:$0xff]
  %v302 = vld [vmem:[%s6 + $0x18] sm:$0xff]
  %v303 = vld [vmem:[%s6 + $0x20] sm:$0xff]
  %v304 = vld [vmem:[%s6 + $0x28] sm:$0xff]
  %v305 = vld [vmem:[%s6 + $0x30] sm:$0xff]
  %v306 = vld [vmem:[%s6 + $0x38] sm:$0xff]
  %v307 = vld [vmem:[%s7] sm:$0x1]
  %v309 = vlaneseq
  %v310 = vshrl.u32 %v309, 7
  %v311 = vsub.s32 0, %v310
  %v312 = vrot.slane %v307, %v311
  %vm314 = vcmask 523264
  %v316 = vsel %vm314, %v298, 0
  %318 = vmatprep.subr.mxu0 0.0
  %319 = vmatpush1.msra.mxu0 %v299
  %320 = vmatprep.subr.mxu0 0.0
  %321 = vmatpush1.msra.mxu0 %v300
  %322 = vmatprep.subr.mxu0 0.0
  %323 = vmatpush1.msra.mxu0 %v301
  %324 = vmatprep.subr.mxu0 0.0
  %325 = vmatpush1.msra.mxu0 %v302
  %326 = vmatprep.subr.mxu0 0.0
  %327 = vmatpush1.msra.mxu0 %v303
  %328 = vmatprep.subr.mxu0 0.0
  %329 = vmatpush1.msra.mxu0 %v304
  %330 = vmatprep.subr.mxu0 0.0
  %331 = vmatpush1.msra.mxu0 %v305
  %332 = vmatprep.subr.mxu0 0.0
  %333 = vmatpush1.msra.mxu0 %v306
  %334 = vmatprep.subr.mxu0 0.0
  %335 = vmatpush1.msra.mxu0 0.0
  %336 = vmatprep.subr.mxu0 0.0
  %337 = vmatpush1.msra.mxu0 0.0
  %338 = vmatprep.subr.mxu0 0.0
  %339 = vmatpush1.msra.mxu0 0.0
  %340 = vmatprep.subr.mxu0 0.0
  %341 = vmatpush1.msra.mxu0 0.0
  %342 = vmatprep.subr.mxu0 0.0
  %343 = vmatpush1.msra.mxu0 0.0
  %344 = vmatprep.subr.mxu0 0.0
  %345 = vmatpush1.msra.mxu0 0.0
  %346 = vmatprep.subr.mxu0 0.0
  %347 = vmatpush1.msra.mxu0 0.0
  %348 = vmatprep.subr.mxu0 0.0
  %349 = vmatpush1.msra.mxu0 0.0
  %350 = vmatprep.subr.mxu0 0.0
  %351 = vmatpush1.msra.mxu0 0.0
  %352 = vmatprep.subr.mxu0 0.0
  %353 = vmatpush1.msra.mxu0 0.0
  %354 = vmatprep.subr.mxu0 0.0
  %355 = vmatpush1.msra.mxu0 0.0
  %356 = vmatprep.subr.mxu0 0.0
  %357 = vmatpush1.msra.mxu0 0.0
  %358 = vmatprep.subr.mxu0 0.0
  %359 = vmatpush1.msra.mxu0 0.0
  %360 = vmatprep.subr.mxu0 0.0
  %361 = vmatpush1.msra.mxu0 0.0
  %362 = vmatprep.subr.mxu0 0.0
  %363 = vmatpush1.msra.mxu0 0.0
  %364 = vmatprep.subr.mxu0 0.0
  %365 = vmatpush1.msra.mxu0 0.0
  %366 = vmatprep.subr.mxu0 0.0
  %367 = vmatpush1.msra.mxu0 0.0
  %368 = vmatprep.subr.mxu0 0.0
  %369 = vmatpush1.msra.mxu0 0.0
  %370 = vmatprep.subr.mxu0 0.0
  %371 = vmatpush1.msra.mxu0 0.0
  %372 = vmatprep.subr.mxu0 0.0
  %373 = vmatpush1.msra.mxu0 0.0
  %374 = vmatprep.subr.mxu0 0.0
  %375 = vmatpush1.msra.mxu0 0.0
  %376 = vmatprep.subr.mxu0 0.0
  %377 = vmatpush1.msra.mxu0 0.0
  %378 = vmatprep.subr.mxu0 0.0
  %379 = vmatpush1.msra.mxu0 0.0
  %380 = vmatprep.subr.mxu0 0.0
  %381 = vmatpush1.msra.mxu0 0.0
  %382 = vmatprep.mubr.f32.mxu0 0.0
  %383 = vmatmul.mubr.f32.gmra.mrb[0].mxu0 %v316
  %v384 = vpop.f32.mrb[0].mxu0
  %v385 = vadd.f32 %v312, %v384
  %v386 = vpop.f32.mrb[0].mxu0
  %387 = vdwg.mxu0
  %vm388 = vcmask 23552
  %389 = vst.msk [vmem:[%s8] sm:$0xff] %vm388, %v385
  // Predicated region
  $region34: #{tpu_custom_call.1} parent=0 // pred_check
    _
  $region35: #{tpu_custom_call.1} parent=0 // pred_check_branch
    %391 = sbr.rel (0) target = $region37
  $region36: #{tpu_custom_call.1} parent=0 // pred_region
    _
  $region37: #{tpu_custom_call.1} parent=0 // pred_fallthru
    _
  // Predicated region
  $region38: #{tpu_custom_call.1} parent=0 // pred_check
    _
  $region39: #{tpu_custom_call.1} parent=0 // pred_check_branch
    %393 = sbr.rel (0) target = $region41
  $region40: #{tpu_custom_call.1} parent=0 // pred_region
    _
  $region41: #{tpu_custom_call.1} parent=0 // pred_fallthru
    _

</llo_original>
